<compile_context>
chip_gen: v5e
topology: v5e:2x2
jax: 0.10.0
libtpu: 0.0.40
codegen_flags: <defaults>
</compile_context>

<pallas_src>
import functools

import numpy as np
import jax
import jax.numpy as jnp
from jax import lax
from jax.experimental import pallas as pl
from jax.experimental.pallas import tpu as pltpu

EPS = 1e-5          # nn.BatchNorm2d default eps
LANE = 128          # TPU lane width


def _round_up(x, m):
    return (x + m - 1) // m * m


def _pick_row_tile(total, target=512):
    """Largest multiple-of-8 divisor of `total` that is <= target (or total)."""
    if total <= target:
        return total
    for t in range(target, 7, -8):
        if total % t == 0:
            return t
    return total


def _pick_batch_tile(n, howo, max_rows=2048):
    """Largest divisor of n s.t. b_tile * HoWo stays a modest VMEM block."""
    best = 1
    for b in range(1, n + 1):
        if n % b == 0 and b * howo <= max_rows:
            best = b
    return best


def _vmem_limit_bytes():
    """Per-generation scoped-VMEM limit (v7x: 64 MiB physical, v5e/v6e: 128)."""
    try:
        cap = int(pltpu.get_tpu_info().vmem_capacity_bytes)
    except Exception:
        cap = 64 * 1024 * 1024
    return int(min(cap * 3 // 4, 96 * 1024 * 1024))


# ------------------------------ Pallas kernels ------------------------------ #

def _conv1_stats_kernel(p_ref, w_ref, y_ref, sum_ref, css_ref):
    """conv1 as one MXU matmul (bf16 in / f32 acc) + per-block BN1 partials.

    p_ref  : (RT, K1)    bf16  im2col patches for RT rows of N*Ho*Wo
    w_ref  : (K1, Cp)    bf16  conv1 weights (lane padded), grid-resident
    y_ref  : (RT, Cp)    bf16  pre-BN conv1 output (lane dense)
    sum_ref: (1, 1, Cp)  f32   per-block sum
    css_ref: (1, 1, Cp)  f32   per-block centered sum-of-squares
    """
    rows = p_ref.shape[0]                                 # static block size
    y = jnp.dot(p_ref[...], w_ref[...], preferred_element_type=jnp.float32)
    y_ref[...] = y.astype(jnp.bfloat16)
    s = jnp.sum(y, axis=0, keepdims=True)
    d = y - s * (1.0 / rows)                              # center at block mean
    sum_ref[0] = s
    css_ref[0] = jnp.sum(d * d, axis=0, keepdims=True)


def _bn1_conv2_stats_kernel(y1_ref, sc1_ref, sh1_ref, w2_ref,
                            y2_ref, sum_ref, css_ref,
                            h1p_ref, p2_ref, *, b_tile, ho, wo, cp):
    """BN1 + ReLU fused with conv2 as ONE concat-K matmul + BN2 partials.

    y1_ref : (B, Ho, Wo, Cp)     bf16  pre-BN conv1 output, B images per step
    sc1/sh1: (1, Cp)             f32   folded BN1 scale / shift (grid-resident)
    w2_ref : (9*Cp, Cp)          bf16  conv2 weights, concat-K layout
    y2_ref : (B, HoWo, Cp)       bf16  pre-BN conv2 output
    sum_ref/css_ref: (B, 1, Cp)  f32   per-image BN2 partials
    h1p_ref: (Ho+2, Wpad, Cp)    f32   VMEM halo scratch (1-wide zero ring)
    p2_ref : (Ho, Wo, 9*Cp)      bf16  VMEM concat-K patch scratch
    """
    howo = ho * wo

    # Re-zero only the 1-wide halo ring (cheap; done every grid step so it is
    # safe under megacore grid sharding, unlike a program_id==0 guard).
    # Columns >= wo+2 of the W-padded scratch are never read by any tap and
    # may stay uninitialized; the interior [1:1+ho, 1:1+wo, :] is fully
    # overwritten for every image below.
    zrow = jnp.zeros((1, wo + 2, cp), jnp.float32)
    zcol = jnp.zeros((ho, 1, cp), jnp.float32)
    h1p_ref[pl.ds(0, 1), pl.ds(0, wo + 2), :] = zrow
    h1p_ref[pl.ds(ho + 1, 1), pl.ds(0, wo + 2), :] = zrow
    h1p_ref[pl.ds(1, ho), pl.ds(0, 1), :] = zcol
    h1p_ref[pl.ds(1, ho), pl.ds(wo + 1, 1), :] = zcol

    sc1 = sc1_ref[...]                                    # hoisted broadcasts
    sh1 = sh1_ref[...]

    for b in range(b_tile):                               # static unroll over images
        # BN1 + ReLU (f32 math on the bf16-stored conv1 output).
        h1 = jnp.maximum(y1_ref[b].astype(jnp.float32) * sc1 + sh1, 0.0)
        h1p_ref[pl.ds(1, ho), pl.ds(1, wo), :] = h1

        # Pack the 9 shifted taps into one lane-aligned bf16 patch matrix.
        # TODO(synk): make h1p_ref bf16 (single cast per image) once packed
        # sublane-offset stores for bf16 are verified on all target Mosaic
        # versions; the f32 halo keeps every offset-1 access in an unpacked
        # dtype while all bf16 stores below stay 128-lane aligned.
        for k in range(9):
            dh, dw = k // 3, k % 3
            p2_ref[:, :, pl.ds(k * cp, cp)] = (
                h1p_ref[pl.ds(dh, ho), pl.ds(dw, wo), :].astype(jnp.bfloat16))

        # conv2 'same' as ONE deep contraction: (HoWo, 9*Cp) x (9*Cp, Cp).
        y2 = jnp.dot(p2_ref[...].reshape(howo, 9 * cp), w2_ref[...],
                     preferred_element_type=jnp.float32)
        y2_ref[b] = y2.astype(jnp.bfloat16)

        # Per-image BN2 partials (sum + centered sum-of-squares), f32.
        s = jnp.sum(y2, axis=0, keepdims=True)
        d = y2 - s * (1.0 / howo)
        sum_ref[b] = s
        css_ref[b] = jnp.sum(d * d, axis=0, keepdims=True)


def _bn2_add_relu_kernel(y2_ref, sc2_ref, sh2_ref, res_ref, o_ref):
    """BN2 + residual add + ReLU, all lane-dense.

    y2_ref : (RT, Cp)  bf16   pre-BN conv2 output rows
    sc2/sh2: (1, Cp)   f32
    res_ref: (RT, Cp)  bf16   shortcut, already channel-padded in the wrapper
    o_ref  : (RT, Cp)  f32    final output rows (real channels in [0, Cout))
    """
    y = y2_ref[...].astype(jnp.float32) * sc2_ref[...] + sh2_ref[...]
    o_ref[...] = jnp.maximum(y + res_ref[...].astype(jnp.float32), 0.0)


# ------------------------------ glue helpers ------------------------------- #

def _im2col(x_nhwc, ksize, stride, pad):
    """(kh, kw, C)-ordered patches -> (N, Ho*Wo, ksize*ksize*C)."""
    n, h, w, c = x_nhwc.shape
    xp = jnp.pad(x_nhwc, ((0, 0), (pad, pad), (pad, pad), (0, 0)))
    ho = (h + 2 * pad - ksize) // stride + 1
    wo = (w + 2 * pad - ksize) // stride + 1
    cols = []
    for dh in range(ksize):
        for dw in range(ksize):
            cols.append(lax.slice(
                xp, (0, dh, dw, 0),
                (n, dh + (ho - 1) * stride + 1, dw + (wo - 1) * stride + 1, c),
                (1, stride, stride, 1)))
    p = jnp.stack(cols, axis=3)                          # (N, Ho, Wo, k*k, C)
    return p.reshape(n, ho * wo, ksize * ksize * c), (ho, wo)


def _torch_conv1_w_to_mat(w_oihw, cp):
    """[Cout, Cin, 3, 3] -> [9*Cin, Cp] (lane padded) in bf16."""
    cout = w_oihw.shape[0]
    m = jnp.transpose(w_oihw, (2, 3, 1, 0)).reshape(-1, cout)
    return jnp.pad(m, ((0, 0), (0, cp - cout))).astype(jnp.bfloat16)


def _torch_conv2_w_to_concatk(w_oihw, cp):
    """[Cout, Cin, 3, 3] -> [9*Cp, Cp] concat-K layout (tap-major) in bf16."""
    cout, cin = w_oihw.shape[0], w_oihw.shape[1]
    m = jnp.transpose(w_oihw, (2, 3, 1, 0))              # (3, 3, Cin, Cout)
    m = jnp.pad(m, ((0, 0), (0, 0), (0, cp - cin), (0, cp - cout)))
    return m.reshape(9 * cp, cp).astype(jnp.bfloat16)


def _finalize_bn(sums, css, rows_per_group, gamma_p, beta_p):
    """Per-group (sum, centered ss) -> folded BN (scale, shift), f32.

    Uses the parallel-variance merge: var*N = sum_g css_g
                                             + n_g * sum_g (mean_g - mean)^2.
    """
    cpn = sums.shape[-1]
    sums = sums.reshape(-1, cpn)
    css = css.reshape(-1, cpn)
    groups = sums.shape[0]
    total = float(rows_per_group * groups)
    mean = jnp.sum(sums, axis=0) / total
    mean_g = sums / float(rows_per_group)
    var = (jnp.sum(css, axis=0)
           + float(rows_per_group)
           * jnp.sum(jnp.square(mean_g - mean[None, :]), axis=0)) / total
    var = jnp.maximum(var, 0.0)
    scale = gamma_p * lax.rsqrt(var + EPS)
    shift = beta_p - mean * scale
    return scale.reshape(1, -1), shift.reshape(1, -1)


# ------------------------------ ResBlock call ------------------------------ #

def res_block_forward(x_nchw, params, in_filter, out_filter, stride):
    n, c, h, w = x_nchw.shape
    assert c == in_filter
    cp = _round_up(out_filter, LANE)                     # lane-dense channel dim
    x = jnp.transpose(x_nchw, (0, 2, 3, 1)).astype(jnp.float32)      # NHWC

    # parameters in kernel layout
    w1m = _torch_conv1_w_to_mat(params["w1"], cp)                    # (9*Cin, Cp) bf16
    w2m = _torch_conv2_w_to_concatk(params["w2"], cp)                # (9*Cp, Cp) bf16
    g1 = jnp.pad(params["gamma1"].astype(jnp.float32), (0, cp - out_filter))
    b1 = jnp.pad(params["beta1"].astype(jnp.float32), (0, cp - out_filter))
    g2 = jnp.pad(params["gamma2"].astype(jnp.float32), (0, cp - out_filter))
    b2 = jnp.pad(params["beta2"].astype(jnp.float32), (0, cp - out_filter))

    # conv1 patches: wrapper-side im2col emitted in bf16.
    # TODO(synk): build the strided conv1 patches in-kernel (like conv2) to
    # drop the p1 HBM round-trip; needs strided sublane slicing of an x block.
    p1, (ho, wo) = _im2col(x, 3, stride, 1)
    howo = ho * wo
    m_rows = n * howo
    kdim = 9 * in_filter
    p1 = p1.reshape(m_rows, kdim).astype(jnp.bfloat16)

    vmem_limit = _vmem_limit_bytes()
    cparams = pltpu.CompilerParams(dimension_semantics=("parallel",),
                                   vmem_limit_bytes=vmem_limit)

    # ---- pass 1: conv1 + BN1 partial stats (row-tiled over N*Ho*Wo) -------- #
    rt1 = _pick_row_tile(m_rows)
    nblk1 = m_rows // rt1
    y1, s1, c1 = pl.pallas_call(
        _conv1_stats_kernel,
        grid=(nblk1,),
        in_specs=[pl.BlockSpec((rt1, kdim), lambda i: (i, 0)),
                  pl.BlockSpec((kdim, cp), lambda i: (0, 0))],
        out_specs=[pl.BlockSpec((rt1, cp), lambda i: (i, 0)),
                   pl.BlockSpec((1, 1, cp), lambda i: (i, 0, 0)),
                   pl.BlockSpec((1, 1, cp), lambda i: (i, 0, 0))],
        out_shape=(jax.ShapeDtypeStruct((m_rows, cp), jnp.bfloat16),
                   jax.ShapeDtypeStruct((nblk1, 1, cp), jnp.float32),
                   jax.ShapeDtypeStruct((nblk1, 1, cp), jnp.float32)),
        compiler_params=cparams,
        cost_estimate=pl.CostEstimate(
            flops=int(2 * m_rows * kdim * cp + 5 * m_rows * cp),
            transcendentals=0,
            bytes_accessed=int(m_rows * kdim * 2 + kdim * cp * 2
                               + m_rows * cp * 2 + nblk1 * 2 * cp * 4)),
    )(p1, w1m)

    sc1, sh1 = _finalize_bn(s1, c1, rt1, g1, b1)

    # ---- pass 2: BN1 + ReLU + conv2 (in-VMEM halo, concat-K) + BN2 stats --- #
    b_tile = _pick_batch_tile(n, howo)
    nblk2 = n // b_tile
    wpad = _round_up(wo + 2, 8)
    kernel2 = functools.partial(_bn1_conv2_stats_kernel,
                                b_tile=b_tile, ho=ho, wo=wo, cp=cp)
    y2, s2, c2 = pl.pallas_call(
        kernel2,
        grid=(nblk2,),
        in_specs=[pl.BlockSpec((b_tile, ho, wo, cp), lambda i: (i, 0, 0, 0)),
                  pl.BlockSpec((1, cp), lambda i: (0, 0)),
                  pl.BlockSpec((1, cp), lambda i: (0, 0)),
                  pl.BlockSpec((9 * cp, cp), lambda i: (0, 0))],
        out_specs=[pl.BlockSpec((b_tile, howo, cp), lambda i: (i, 0, 0)),
                   pl.BlockSpec((b_tile, 1, cp), lambda i: (i, 0, 0)),
                   pl.BlockSpec((b_tile, 1, cp), lambda i: (i, 0, 0))],
        out_shape=(jax.ShapeDtypeStruct((n, howo, cp), jnp.bfloat16),
                   jax.ShapeDtypeStruct((n, 1, cp), jnp.float32),
                   jax.ShapeDtypeStruct((n, 1, cp), jnp.float32)),
        scratch_shapes=[pltpu.VMEM((ho + 2, wpad, cp), jnp.float32),
                        pltpu.VMEM((ho, wo, 9 * cp), jnp.bfloat16)],
        compiler_params=cparams,
        cost_estimate=pl.CostEstimate(
            flops=int(2 * m_rows * 9 * cp * cp + 14 * m_rows * cp),
            transcendentals=0,
            bytes_accessed=int(2 * m_rows * cp * 2 + 9 * cp * cp * 2
                               + n * 2 * cp * 4)),
    )(y1.reshape(n, ho, wo, cp), sc1, sh1, w2m)

    sc2, sh2 = _finalize_bn(s2, c2, howo, g2, b2)

    # ---- shortcut: tiny avg-pool + channel placement + lane pad in wrapper -- #
    if in_filter != out_filter:
        # F.pad([0,1,0,1]) + AvgPool2d(stride, stride) == plain stride x stride
        # average pooling when H, W are divisible by stride (>1).
        assert stride > 1 and h % stride == 0 and w % stride == 0
        pooled = x.reshape(n, ho, stride, wo, stride, in_filter).mean(axis=(2, 4))
        pad_lo = (out_filter - in_filter) // 2
        res = jnp.pad(pooled, ((0, 0), (0, 0), (0, 0),
                               (pad_lo, cp - in_filter - pad_lo)))
    else:
        # PyTorch module only pools when channel counts differ; identity
        # shortcut is only shape-consistent for stride == 1.
        assert stride == 1, "identity shortcut requires stride == 1"
        res = jnp.pad(x, ((0, 0), (0, 0), (0, 0), (0, cp - in_filter)))
    res = res.reshape(m_rows, cp).astype(jnp.bfloat16)   # lane-dense bf16 shortcut

    # ---- pass 3: BN2 + residual add + ReLU (row-tiled over N*Ho*Wo) -------- #
    rt3 = _pick_row_tile(m_rows)
    nblk3 = m_rows // rt3
    out_p = pl.pallas_call(
        _bn2_add_relu_kernel,
        grid=(nblk3,),
        in_specs=[pl.BlockSpec((rt3, cp), lambda i: (i, 0)),
                  pl.BlockSpec((1, cp), lambda i: (0, 0)),
                  pl.BlockSpec((1, cp), lambda i: (0, 0)),
                  pl.BlockSpec((rt3, cp), lambda i: (i, 0))],
        out_specs=pl.BlockSpec((rt3, cp), lambda i: (i, 0)),
        out_shape=jax.ShapeDtypeStruct((m_rows, cp), jnp.float32),
        compiler_params=cparams,
        cost_estimate=pl.CostEstimate(
            flops=int(5 * m_rows * cp),
            transcendentals=0,
            bytes_accessed=int(2 * m_rows * cp * 2 + m_rows * cp * 4)),
    )(y2.reshape(m_rows, cp), sc2, sh2, res)

    out = out_p[:, :out_filter].reshape(n, ho, wo, out_filter)
    return jnp.transpose(out, (0, 3, 1, 2))              # NHWC -> NCHW


# ------------------------------ pure-JAX reference ------------------------- #

def _bn_train(y, gamma, beta):
    mean = jnp.mean(y, axis=(0, 2, 3), keepdims=True)
    var = jnp.mean(jnp.square(y - mean), axis=(0, 2, 3), keepdims=True)
    return (y - mean) * lax.rsqrt(var + EPS) * gamma.reshape(1, -1, 1, 1) + \
        beta.reshape(1, -1, 1, 1)


def res_block_reference(x, params, in_filter, out_filter, stride):
    dn = ("NCHW", "OIHW", "NCHW")
    y = lax.conv_general_dilated(x, params["w1"], (stride, stride), ((1, 1), (1, 1)),
                                 dimension_numbers=dn,
                                 precision=lax.Precision.HIGHEST)
    y = jnp.maximum(_bn_train(y, params["gamma1"], params["beta1"]), 0.0)
    y = lax.conv_general_dilated(y, params["w2"], (1, 1), ((1, 1), (1, 1)),
                                 dimension_numbers=dn,
                                 precision=lax.Precision.HIGHEST)
    y = _bn_train(y, params["gamma2"], params["beta2"])
    if in_filter != out_filter:
        xo = jnp.pad(x, ((0, 0), (0, 0), (0, 1), (0, 1)))            # F.pad [0,1,0,1]
        xo = lax.reduce_window(xo, 0.0, lax.add,
                               (1, 1, stride, stride), (1, 1, stride, stride),
                               "VALID") / float(stride * stride)
        pad_c = (out_filter - in_filter) // 2
        xo = jnp.pad(xo, ((0, 0), (pad_c, pad_c), (0, 0), (0, 0)))   # channel pad
    else:
        xo = x
    return jnp.maximum(y + xo, 0.0)


# ----------------------------------- main ----------------------------------- #

if __name__ == "__main__":
    N, Cin, H, W = 2, 4, 16, 16
    Cout, stride = 8, 2

    key = jax.random.PRNGKey(0)
    kw1, kw2, kx = jax.random.split(key, 3)

    # Deterministic parameter init (Conv2d kaiming-uniform-style bounds, BN defaults).
    bound1 = 1.0 / np.sqrt(Cin * 3 * 3)
    bound2 = 1.0 / np.sqrt(Cout * 3 * 3)
    params = dict(
        w1=jax.random.uniform(kw1, (Cout, Cin, 3, 3), jnp.float32, -bound1, bound1),
        w2=jax.random.uniform(kw2, (Cout, Cout, 3, 3), jnp.float32, -bound2, bound2),
        gamma1=jnp.ones((Cout,), jnp.float32),
        beta1=jnp.zeros((Cout,), jnp.float32),
        gamma2=jnp.ones((Cout,), jnp.float32),
        beta2=jnp.zeros((Cout,), jnp.float32),
    )

    x = jax.random.normal(kx, (N, Cin, H, W), jnp.float32)

    out = jax.block_until_ready(res_block_forward(x, params, Cin, Cout, stride))
    assert out.shape == (N, Cout, H // stride, W // stride), out.shape

    ref = jax.block_until_ready(res_block_reference(x, params, Cin, Cout, stride))
    np.testing.assert_allclose(np.asarray(out), np.asarray(ref), rtol=2e-2, atol=2e-2)

    print("KERNEL_OK")
</pallas_src>

<mosaic_0001>
module attributes {stable_mosaic.version = 11 : i64} {
  func.func @_conv1_stats_kernel(%arg0: i32, %arg1: memref<128x36xbf16, #tpu.memory_space<vmem>>, %arg2: memref<36x128xbf16, #tpu.memory_space<vmem>>, %arg3: memref<128x128xbf16, #tpu.memory_space<vmem>>, %arg4: memref<1x1x128xf32, #tpu.memory_space<vmem>>, %arg5: memref<1x1x128xf32, #tpu.memory_space<vmem>>) attributes {dimension_semantics = [#tpu.dimension_semantics<parallel>], iteration_bounds = array<i64: 1>, scalar_prefetch = 0 : i64, scratch_operands = 0 : i64, tpu.core_type = #tpu.core_type<tc>, window_params = [{transform_indices = @transform_0, window_bounds = array<i64: 128, 36>}, {pipeline_mode = #tpu.pipeline_mode<synchronous>, transform_indices = @transform_1, window_bounds = array<i64: 36, 128>}, {transform_indices = @transform_2, window_bounds = array<i64: 128, 128>}, {transform_indices = @transform_3, window_bounds = array<i64: 1, 1, 128>}, {transform_indices = @transform_4, window_bounds = array<i64: 1, 1, 128>}]} {
    %c0 = arith.constant 0 : index
    %c0_0 = arith.constant 0 : index
    %0 = vector.load %arg1[%c0, %c0_0] : memref<128x36xbf16, #tpu.memory_space<vmem>>, vector<128x36xbf16>
    %c0_1 = arith.constant 0 : index
    %c0_2 = arith.constant 0 : index
    %1 = vector.load %arg2[%c0_1, %c0_2] : memref<36x128xbf16, #tpu.memory_space<vmem>>, vector<36x128xbf16>
    %cst = arith.constant dense<0.000000e+00> : vector<128x128xf32>
    %2 = tpu.matmul %0, %1, %cst {dimension_numbers = #tpu.dot_dimension_numbers<[1], [0], [0], [1], [0, 0, 1, 1], [], []>} : vector<128x36xbf16>, vector<36x128xbf16>, vector<128x128xf32> -> vector<128x128xf32>
    %3 = arith.truncf %2 : vector<128x128xf32> to vector<128x128xbf16>
    %c0_3 = arith.constant 0 : index
    %c0_4 = arith.constant 0 : index
    %4 = vector.load %arg3[%c0_3, %c0_4] : memref<128x128xbf16, #tpu.memory_space<vmem>>, vector<128x128xbf16>
    tpu.vector_store %arg3[%c0_3, %c0_4], %3 {strides = array<i32>} : memref<128x128xbf16, #tpu.memory_space<vmem>>, vector<128x128xbf16>,
    %cst_5 = arith.constant dense<0.000000e+00> : vector<128xf32>
    %5 = vector.multi_reduction <add>, %2, %cst_5 [0] : vector<128x128xf32> to vector<128xf32>
    %6 = vector.shape_cast %5 : vector<128xf32> to vector<1x128xf32>
    %cst_6 = arith.constant 7.812500e-03 : f32
    %7 = vector.broadcast %cst_6 : f32 to vector<1x128xf32>
    %8 = arith.mulf %6, %7 : vector<1x128xf32>
    %9 = vector.broadcast %8 : vector<1x128xf32> to vector<128x128xf32>
    %10 = arith.subf %2, %9 : vector<128x128xf32>
    %c0_7 = arith.constant 0 : index
    %c0_8 = arith.constant 0 : index
    %c0_9 = arith.constant 0 : index
    %11 = vector.load %arg4[%c0_7, %c0_8, %c0_9] : memref<1x1x128xf32, #tpu.memory_space<vmem>>, vector<1x1x128xf32>
    %12 = vector.shape_cast %11 : vector<1x1x128xf32> to vector<1x128xf32>
    %13 = vector.shape_cast %6 : vector<1x128xf32> to vector<1x1x128xf32>
    tpu.vector_store %arg4[%c0_7, %c0_8, %c0_9], %13 {strides = array<i32>} : memref<1x1x128xf32, #tpu.memory_space<vmem>>, vector<1x1x128xf32>,
    %14 = arith.mulf %10, %10 : vector<128x128xf32>
    %cst_10 = arith.constant dense<0.000000e+00> : vector<128xf32>
    %15 = vector.multi_reduction <add>, %14, %cst_10 [0] : vector<128x128xf32> to vector<128xf32>
    %16 = vector.shape_cast %15 : vector<128xf32> to vector<1x128xf32>
    %c0_11 = arith.constant 0 : index
    %c0_12 = arith.constant 0 : index
    %c0_13 = arith.constant 0 : index
    %17 = vector.load %arg5[%c0_11, %c0_12, %c0_13] : memref<1x1x128xf32, #tpu.memory_space<vmem>>, vector<1x1x128xf32>
    %18 = vector.shape_cast %17 : vector<1x1x128xf32> to vector<1x128xf32>
    %19 = vector.shape_cast %16 : vector<1x128xf32> to vector<1x1x128xf32>
    tpu.vector_store %arg5[%c0_11, %c0_12, %c0_13], %19 {strides = array<i32>} : memref<1x1x128xf32, #tpu.memory_space<vmem>>, vector<1x1x128xf32>,
    return
  }
  func.func @transform_0(%arg0: i32) -> (i32, i32) {
    %c0_i32 = arith.constant 0 : i32
    %c0_i32_0 = arith.constant 0 : i32
    return %arg0, %c0_i32 : i32, i32
  }
  func.func @transform_1(%arg0: i32) -> (i32, i32) {
    %c0_i32 = arith.constant 0 : i32
    %c0_i32_0 = arith.constant 0 : i32
    %c0_i32_1 = arith.constant 0 : i32
    return %c0_i32, %c0_i32_0 : i32, i32
  }
  func.func @transform_2(%arg0: i32) -> (i32, i32) {
    %c0_i32 = arith.constant 0 : i32
    %c0_i32_0 = arith.constant 0 : i32
    return %arg0, %c0_i32 : i32, i32
  }
  func.func @transform_3(%arg0: i32) -> (i32, i32, i32) {
    %c0_i32 = arith.constant 0 : i32
    %c0_i32_0 = arith.constant 0 : i32
    %c0_i32_1 = arith.constant 0 : i32
    return %arg0, %c0_i32, %c0_i32_0 : i32, i32, i32
  }
  func.func @transform_4(%arg0: i32) -> (i32, i32, i32) {
    %c0_i32 = arith.constant 0 : i32
    %c0_i32_0 = arith.constant 0 : i32
    %c0_i32_1 = arith.constant 0 : i32
    return %arg0, %c0_i32, %c0_i32_0 : i32, i32, i32
  }
}

</mosaic_0001>

<llo_original>
// kernel: tpu_custom_call.1
$region0: #{tpu_custom_call.1}
  #allocation0 [shape = 'u32[]', space=smem, size = 0x4, offset = 0x4, fixed_abs, tag = 'smem constant byte address 0x4 - core index']
  #allocation1 [shape = 'u32[72,128]{1,0:T(1,128)}', space=vmem, size = 0x9000, scoped, tag = 'internal scratch']
  %s0 = inlined_call_operand.vmem [shape: bf16[128,36], index: 0, kind: input, shape index: {}]
  %s1 = inlined_call_operand.vmem [shape: bf16[36,128], index: 1, kind: input, shape index: {}]
  %s2 = inlined_call_operand.hbm [shape: bf16[128,128], index: 2, kind: output, shape index: {0}]
  %s3 = inlined_call_operand.hbm [shape: f32[1,1,128], index: 3, kind: output, shape index: {1}]
  %s4 = inlined_call_operand.hbm [shape: f32[1,1,128], index: 4, kind: output, shape index: {2}]
  %5 = xla_tuple %s2, %s3, %s4
  %s6 = sld [smem:[#allocation0]]
  $region34: #{tpu_custom_call.1} parent=0
    _
  %s8 = ssub.s32 1, %s6
  %s9 = scalar_select 0, %s8, %s6
  $region1: #{tpu_custom_call.1} parent=0
    #allocation2 [shape = 'u8[32768]{0}', space=vmem, size = 0x8000, scoped, tag = 'output window, operand 0, single buffered']
    #allocation3 [shape = 's32[1]{0}', space=sflag, size = 0x4, scoped, tag = 'scoped memory for tpu_custom_call.1']
    #allocation4 [shape = 'u8[512]{0}', space=vmem, size = 0x400, scoped, tag = 'output window, operand 1, single buffered']
    #allocation5 [shape = 's32[1]{0}', space=sflag, size = 0x4, scoped, tag = 'scoped memory for tpu_custom_call.1']
    #allocation6 [shape = 'u8[512]{0}', space=vmem, size = 0x400, scoped, tag = 'output window, operand 2, single buffered']
    %10 = vsyncpa [#allocation3], 0
    %11 = vsyncpa [#allocation5], 0
    // Predicated region
    $region2: #{tpu_custom_call.1} parent=1 // pred_check
      _
    $region3: #{tpu_custom_call.1} parent=1 // pred_check_branch
      %13 = sbr.rel (0) target = $region5
    $region4: #{tpu_custom_call.1} parent=1 // pred_region
      _
    $region5: #{tpu_custom_call.1} parent=1 // pred_fallthru
      _
    // Predicated region
    $region6: #{tpu_custom_call.1} parent=1 // pred_check
      _
    $region7: #{tpu_custom_call.1} parent=1 // pred_check_branch
      %15 = sbr.rel (0) target = $region9
    $region8: #{tpu_custom_call.1} parent=1 // pred_region
      _
    $region9: #{tpu_custom_call.1} parent=1 // pred_fallthru
      _
    %v17 = vld [vmem:[%s0] sm:$0xf]
    %v18 = vld [vmem:[%s0 + $0x4] sm:$0xf]
    %v19 = vld [vmem:[%s0 + $0x8] sm:$0xf]
    %v20 = vld [vmem:[%s0 + $0xc] sm:$0xf]
    %v21 = vld [vmem:[%s0 + $0x10] sm:$0xf]
    %v22 = vld [vmem:[%s0 + $0x14] sm:$0xf]
    %v23 = vld [vmem:[%s0 + $0x18] sm:$0xf]
    %v24 = vld [vmem:[%s0 + $0x1c] sm:$0xf]
    %v25 = vld [vmem:[%s0 + $0x20] sm:$0xf]
    %v26 = vld [vmem:[%s0 + $0x24] sm:$0xf]
    %v27 = vld [vmem:[%s0 + $0x28] sm:$0xf]
    %v28 = vld [vmem:[%s0 + $0x2c] sm:$0xf]
    %v29 = vld [vmem:[%s0 + $0x30] sm:$0xf]
    %v30 = vld [vmem:[%s0 + $0x34] sm:$0xf]
    %v31 = vld [vmem:[%s0 + $0x38] sm:$0xf]
    %v32 = vld [vmem:[%s0 + $0x3c] sm:$0xf]
    %v33 = vld [vmem:[%s1] sm:$0xf]
    %v34 = vld [vmem:[%s1 + $0x4] sm:$0xf]
    %v35 = vld [vmem:[%s1 + $0x8] sm:$0xf]
    %v36 = vld [vmem:[%s1 + $0xc] sm:$0xf]
    %v37 = vld [vmem:[%s1 + $0x10] sm:$0x3]
    %v54 = vunpack.c.l.b16 %v17
    %v55 = vunpack.c.l.b16 %v18
    %v56 = vunpack.c.l.b16 %v19
    %v57 = vunpack.c.l.b16 %v20
    %v58 = vunpack.c.l.b16 %v21
    %v59 = vunpack.c.l.b16 %v22
    %v60 = vunpack.c.l.b16 %v23
    %v61 = vunpack.c.l.b16 %v24
    %v62 = vunpack.c.l.b16 %v25
    %v63 = vunpack.c.l.b16 %v26
    %v64 = vunpack.c.l.b16 %v27
    %v65 = vunpack.c.l.b16 %v28
    %v66 = vunpack.c.l.b16 %v29
    %v67 = vunpack.c.l.b16 %v30
    %v68 = vunpack.c.l.b16 %v31
    %v69 = vunpack.c.l.b16 %v32
    %v70 = vpack.c.b16 %v55, %v54
    %v71 = vpack.c.b16 %v57, %v56
    %v72 = vpack.c.b16 %v59, %v58
    %v73 = vpack.c.b16 %v61, %v60
    %v74 = vpack.c.b16 %v63, %v62
    %v75 = vpack.c.b16 %v65, %v64
    %v76 = vpack.c.b16 %v67, %v66
    %v77 = vpack.c.b16 %v69, %v68
    %v83 = vunpack.c.l.b16 %v33
    %v84 = vunpack.c.l.b16 %v34
    %v85 = vunpack.c.l.b16 %v35
    %v86 = vunpack.c.l.b16 %v36
    %v87 = vunpack.c.l.b16 %v37
    %v88 = vpack.c.b16 %v84, %v83
    %v89 = vpack.c.b16 %v86, %v85
    %v90 = vpack.c.b16 %v87, %v87
    %vm93 = vcmask 293888
    %v95 = vsel %vm93, %v70, 0
    %v98 = vsel %vm93, %v71, 0
    %v101 = vsel %vm93, %v72, 0
    %v104 = vsel %vm93, %v73, 0
    %v107 = vsel %vm93, %v74, 0
    %v110 = vsel %vm93, %v75, 0
    %v113 = vsel %vm93, %v76, 0
    %v116 = vsel %vm93, %v77, 0
    %vm118 = vcmask 1041408
    %v120 = vsel %vm118, %v90, 0
    %122 = vmatpush.bf16.msra.mxu0 0
    %123 = vmatpush.bf16.msra.mxu0 0
    %124 = vmatpush.bf16.msra.mxu0 0
    %125 = vmatpush.bf16.msra.mxu0 0
    %126 = vmatpush.bf16.msra.mxu0 0
    %127 = vmatpush.bf16.msra.mxu0 %v120
    %128 = vmatpush.bf16.msra.mxu0 %v89
    %129 = vmatpush.bf16.msra.mxu0 %v88
    %130 = vmatmul.bf16.gmra.mxu0 %v95
    %v131 = vpop.f32.mrf.mxu0
    %v132 = vadd.f32 0.0, %v131
    %v133 = vpop.f32.mrf.mxu0
    %v134 = vadd.f32 0.0, %v133
    %135 = vmatmul.bf16.gmra.mxu0 %v98
    %v136 = vpop.f32.mrf.mxu0
    %v137 = vadd.f32 0.0, %v136
    %v138 = vpop.f32.mrf.mxu0
    %v139 = vadd.f32 0.0, %v138
    %140 = vmatmul.bf16.gmra.mxu0 %v101
    %v141 = vpop.f32.mrf.mxu0
    %v142 = vadd.f32 0.0, %v141
    %v143 = vpop.f32.mrf.mxu0
    %v144 = vadd.f32 0.0, %v143
    %145 = vmatmul.bf16.gmra.mxu0 %v104
    %v146 = vpop.f32.mrf.mxu0
    %v147 = vadd.f32 0.0, %v146
    %v148 = vpop.f32.mrf.mxu0
    %v149 = vadd.f32 0.0, %v148
    %150 = vmatmul.bf16.gmra.mxu0 %v107
    %v151 = vpop.f32.mrf.mxu0
    %v152 = vadd.f32 0.0, %v151
    %v153 = vpop.f32.mrf.mxu0
    %v154 = vadd.f32 0.0, %v153
    %155 = vmatmul.bf16.gmra.mxu0 %v110
    %v156 = vpop.f32.mrf.mxu0
    %v157 = vadd.f32 0.0, %v156
    %v158 = vpop.f32.mrf.mxu0
    %v159 = vadd.f32 0.0, %v158
    %160 = vmatmul.bf16.gmra.mxu0 %v113
    %v161 = vpop.f32.mrf.mxu0
    %v162 = vadd.f32 0.0, %v161
    %v163 = vpop.f32.mrf.mxu0
    %v164 = vadd.f32 0.0, %v163
    %165 = vmatmul.bf16.gmra.mxu0 %v116
    %v166 = vpop.f32.mrf.mxu0
    %v167 = vadd.f32 0.0, %v166
    %v168 = vpop.f32.mrf.mxu0
    %v169 = vadd.f32 0.0, %v168
    %170 = vdwg.mxu0
    %v171 = vpack.c.bf16 %v132, %v132
    %v172 = vpack.c.bf16 %v134, %v134
    %v173 = vpack.c.bf16 %v137, %v137
    %v174 = vpack.c.bf16 %v139, %v139
    %v175 = vpack.c.bf16 %v142, %v142
    %v176 = vpack.c.bf16 %v144, %v144
    %v177 = vpack.c.bf16 %v147, %v147
    %v178 = vpack.c.bf16 %v149, %v149
    %v179 = vpack.c.bf16 %v152, %v152
    %v180 = vpack.c.bf16 %v154, %v154
    %v181 = vpack.c.bf16 %v157, %v157
    %v182 = vpack.c.bf16 %v159, %v159
    %v183 = vpack.c.bf16 %v162, %v162
    %v184 = vpack.c.bf16 %v164, %v164
    %v185 = vpack.c.bf16 %v167, %v167
    %v186 = vpack.c.bf16 %v169, %v169
    %187 = vst [vmem:[#allocation2] sm:$0xf] %v171
    %188 = vst [vmem:[#allocation2 + $0x4] sm:$0xf] %v172
    %189 = vst [vmem:[#allocation2 + $0x8] sm:$0xf] %v173
    %190 = vst [vmem:[#allocation2 + $0xc] sm:$0xf] %v174
    %191 = vst [vmem:[#allocation2 + $0x10] sm:$0xf] %v175
    %192 = vst [vmem:[#allocation2 + $0x14] sm:$0xf] %v176
    %193 = vst [vmem:[#allocation2 + $0x18] sm:$0xf] %v177
    %194 = vst [vmem:[#allocation2 + $0x1c] sm:$0xf] %v178
    %195 = vst [vmem:[#allocation2 + $0x20] sm:$0xf] %v179
    %196 = vst [vmem:[#allocation2 + $0x24] sm:$0xf] %v180
    %197 = vst [vmem:[#allocation2 + $0x28] sm:$0xf] %v181
    %198 = vst [vmem:[#allocation2 + $0x2c] sm:$0xf] %v182
    %199 = vst [vmem:[#allocation2 + $0x30] sm:$0xf] %v183
    %200 = vst [vmem:[#allocation2 + $0x34] sm:$0xf] %v184
    %201 = vst [vmem:[#allocation2 + $0x38] sm:$0xf] %v185
    %202 = vst [vmem:[#allocation2 + $0x3c] sm:$0xf] %v186
    %v203 = vadd.f32 %v132, %v134
    %v204 = vadd.f32 %v203, %v137
    %v205 = vadd.f32 %v204, %v139
    %v206 = vadd.f32 %v205, %v142
    %v207 = vadd.f32 %v206, %v144
    %v208 = vadd.f32 %v207, %v147
    %v209 = vadd.f32 %v208, %v149
    %v210 = vadd.f32 %v209, %v152
    %v211 = vadd.f32 %v210, %v154
    %v212 = vadd.f32 %v211, %v157
    %v213 = vadd.f32 %v212, %v159
    %v214 = vadd.f32 %v213, %v162
    %v215 = vadd.f32 %v214, %v164
    %v216 = vadd.f32 %v215, %v167
    %v217 = vadd.f32 %v216, %v169
    %v218 = vrot.slane %v217, 4
    %v219 = vadd.f32 %v217, %v218
    %v220 = vrot.slane %v219, 2
    %v221 = vadd.f32 %v219, %v220
    %v222 = vrot.slane %v221, 1
    %v223 = vadd.f32 %v221, %v222
    %v224 = vmul.f32 %v223, 0.0078125
    %v225 = vsub.f32 %v132, %v224
    %v226 = vsub.f32 %v134, %v224
    %v227 = vsub.f32 %v137, %v224
    %v228 = vsub.f32 %v139, %v224
    %v229 = vsub.f32 %v142, %v224
    %v230 = vsub.f32 %v144, %v224
    %v231 = vsub.f32 %v147, %v224
    %v232 = vsub.f32 %v149, %v224
    %v233 = vsub.f32 %v152, %v224
    %v234 = vsub.f32 %v154, %v224
    %v235 = vsub.f32 %v157, %v224
    %v236 = vsub.f32 %v159, %v224
    %v237 = vsub.f32 %v162, %v224
    %v238 = vsub.f32 %v164, %v224
    %v239 = vsub.f32 %v167, %v224
    %v240 = vsub.f32 %v169, %v224
    %241 = vst [vmem:[#allocation4] sm:$0x1] %v223
    %v242 = vmul.f32 %v225, %v225
    %v243 = vmul.f32 %v226, %v226
    %v244 = vmul.f32 %v227, %v227
    %v245 = vmul.f32 %v228, %v228
    %v246 = vmul.f32 %v229, %v229
    %v247 = vmul.f32 %v230, %v230
    %v248 = vmul.f32 %v231, %v231
    %v249 = vmul.f32 %v232, %v232
    %v250 = vmul.f32 %v233, %v233
    %v251 = vmul.f32 %v234, %v234
    %v252 = vmul.f32 %v235, %v235
    %v253 = vmul.f32 %v236, %v236
    %v254 = vmul.f32 %v237, %v237
    %v255 = vmul.f32 %v238, %v238
    %v256 = vmul.f32 %v239, %v239
    %v257 = vmul.f32 %v240, %v240
    %v258 = vadd.f32 %v242, %v243
    %v259 = vadd.f32 %v258, %v244
    %v260 = vadd.f32 %v259, %v245
    %v261 = vadd.f32 %v260, %v246
    %v262 = vadd.f32 %v261, %v247
    %v263 = vadd.f32 %v262, %v248
    %v264 = vadd.f32 %v263, %v249
    %v265 = vadd.f32 %v264, %v250
    %v266 = vadd.f32 %v265, %v251
    %v267 = vadd.f32 %v266, %v252
    %v268 = vadd.f32 %v267, %v253
    %v269 = vadd.f32 %v268, %v254
    %v270 = vadd.f32 %v269, %v255
    %v271 = vadd.f32 %v270, %v256
    %v272 = vadd.f32 %v271, %v257
    %v273 = vrot.slane %v272, 4
    %v274 = vadd.f32 %v272, %v273
    %v275 = vrot.slane %v274, 2
    %v276 = vadd.f32 %v274, %v275
    %v277 = vrot.slane %v276, 1
    %v278 = vadd.f32 %v276, %v277
    %279 = vst [vmem:[#allocation6] sm:$0x1] %v278
    // Predicated region
    $region10: #{tpu_custom_call.1} parent=1 // pred_check
      _
    $region11: #{tpu_custom_call.1} parent=1 // pred_check_branch
      %281 = sbr.rel (0) target = $region13
    $region12: #{tpu_custom_call.1} parent=1 // pred_region
      %283 = vsyncadd [#allocation3], 0
      %s284 = sshll.u32 [#allocation2], 4
      %s285 = int_to_ptr.vmem [resolvable:$true] %s284
      %s286 = sshll.u32 %s2, 4
      %s287 = int_to_ptr.hbm [resolvable:$true] %s286
      %292 = dma.vmem_to_hbm [thread:$0]  %s285, 1024, %s287, [#allocation3], 64, 64, 4
    $region13: #{tpu_custom_call.1} parent=1 // pred_fallthru
      _
    // Predicated region
    $region14: #{tpu_custom_call.1} parent=1 // pred_check
      _
    $region15: #{tpu_custom_call.1} parent=1 // pred_check_branch
      %294 = sbr.rel (0) target = $region17
    $region16: #{tpu_custom_call.1} parent=1 // pred_region
      %296 = vsyncadd [#allocation5], 0
      %s298 = sshll.u32 [#allocation4], 4
      %s299 = int_to_ptr.vmem [resolvable:$true] %s298
      %s300 = sshll.u32 %s3, 4
      %s301 = int_to_ptr.hbm [resolvable:$true] %s300
      %303 = dma.vmem_to_hbm [thread:$0]  %s299, 16, %s301, [#allocation5]
    $region17: #{tpu_custom_call.1} parent=1 // pred_fallthru
      _
    // Predicated region
    $region18: #{tpu_custom_call.1} parent=1 // pred_check
      _
    $region19: #{tpu_custom_call.1} parent=1 // pred_check_branch
      %305 = sbr.rel (0) target = $region21
    $region20: #{tpu_custom_call.1} parent=1 // pred_region
      %307 = vsyncadd [#allocation5], 0
      %s309 = sshll.u32 [#allocation6], 4
      %s310 = int_to_ptr.vmem [resolvable:$true] %s309
      %s311 = sshll.u32 %s4, 4
      %s312 = int_to_ptr.hbm [resolvable:$true] %s311
      %314 = dma.vmem_to_hbm [thread:$0]  %s310, 16, %s312, [#allocation5]
    $region21: #{tpu_custom_call.1} parent=1 // pred_fallthru
      _
    // Predicated region
    $region22: #{tpu_custom_call.1} parent=1 // pred_check
      _
    $region23: #{tpu_custom_call.1} parent=1 // pred_check_branch
      %316 = sbr.rel (0) target = $region25
    $region24: #{tpu_custom_call.1} parent=1 // pred_region
      %318 = dma.done [#allocation3], 1024
    $region25: #{tpu_custom_call.1} parent=1 // pred_fallthru
      _
    // Predicated region
    $region26: #{tpu_custom_call.1} parent=1 // pred_check
      _
    $region27: #{tpu_custom_call.1} parent=1 // pred_check_branch
      %320 = sbr.rel (0) target = $region29
    $region28: #{tpu_custom_call.1} parent=1 // pred_region
      %322 = dma.done [#allocation5], 16
    $region29: #{tpu_custom_call.1} parent=1 // pred_fallthru
      _
    // Predicated region
    $region30: #{tpu_custom_call.1} parent=1 // pred_check
      _
    $region31: #{tpu_custom_call.1} parent=1 // pred_check_branch
      %324 = sbr.rel (0) target = $region33
    $region32: #{tpu_custom_call.1} parent=1 // pred_region
      %326 = dma.done [#allocation5], 16
    $region33: #{tpu_custom_call.1} parent=1 // pred_fallthru
      _
    %327 = vsyncpa [#allocation3], 1
    %328 = vsyncpa [#allocation5], 1

</llo_original>
